<compile_context>
chip_gen: v6e
topology: v6e:2x2x1
jax: 0.10.0
libtpu: 0.0.40
codegen_flags: <defaults>
</compile_context>

<pallas_src>
import jax
import jax.numpy as jnp
from jax.experimental import pallas as pl
from jax.experimental.pallas import tpu as pltpu


def _layer_scale_kernel(x_ref, g_ref, o_ref):
    # Elementwise multiply; gamma (1, dim) fp32 broadcasts over the row tile.
    # Compute in fp32, cast the product to the output dtype.
    o_ref[...] = (x_ref[...].astype(jnp.float32) * g_ref[...]).astype(o_ref.dtype)


def layer_scale(x: jax.Array, gamma: jax.Array, *, vmem_budget_bytes: int = 8 << 20) -> jax.Array:
    """y = x * gamma, gamma broadcast over the last axis of x."""
    orig_shape = x.shape
    dim = orig_shape[-1]
    assert gamma.shape == (dim,), f"gamma must have shape ({dim},), got {gamma.shape}"

    x2 = x.reshape(-1, dim)                 # (rows, dim), channel axis on lanes
    rows, d = x2.shape
    g2 = gamma.astype(jnp.float32)

    # Lane-dense folding: if dim < 128 and divides 128, fold k rows into lanes
    # so the output last dim is a full 128-lane multiple (avoids masked vst.msk).
    if d < 128 and 128 % d == 0:
        k = 128 // d
        if rows % k == 0:
            rows //= k
            d *= k
            x2 = x2.reshape(rows, d)
            g2 = jnp.tile(g2, k)
    g2 = g2.reshape(1, d)

    dtype_bytes = jnp.dtype(x.dtype).itemsize
    sublane = {4: 8, 2: 16, 1: 32}.get(dtype_bytes, 8)   # packed sublane count

    # Row tile sized so double-buffered x-in + out (~4 * tm * d * bytes) stays
    # within the VMEM budget; keep tm a multiple of the sublane packing.
    tm_target = vmem_budget_bytes // (4 * d * dtype_bytes)
    tm_target = max(sublane, min(4096, (tm_target // sublane) * sublane))

    if rows <= tm_target:
        tm = rows                            # full extent: always a legal block
        grid = (1,)
    else:
        tm = tm_target                       # sublane-aligned fixed tile
        grid = (pl.cdiv(rows, tm),)          # Pallas pads the partial last block

    cost = pl.CostEstimate(
        flops=rows * d,
        transcendentals=0,
        bytes_accessed=2 * rows * d * dtype_bytes + d * 4,
    )

    out2 = pl.pallas_call(
        _layer_scale_kernel,
        out_shape=jax.ShapeDtypeStruct((rows, d), x.dtype),
        grid_spec=pltpu.PrefetchScalarGridSpec(
            num_scalar_prefetch=0,
            grid=grid,
            in_specs=[
                pl.BlockSpec((tm, d), lambda i: (i, 0)),   # x row tile
                pl.BlockSpec((1, d), lambda i: (0, 0)),    # gamma (resident)
            ],
            out_specs=pl.BlockSpec((tm, d), lambda i: (i, 0)),
        ),
        compiler_params=pltpu.CompilerParams(
            dimension_semantics=("parallel",),   # shards rows across TCs on v7x
        ),
        cost_estimate=cost,
    )(x2, g2)

    return out2.reshape(orig_shape)


if __name__ == "__main__":
    # Shapes consistent with transformer usage of LayerScale: (B, N, dim).
    B, N, dim = 2, 8, 32
    init_values = 1e-5

    key = jax.random.PRNGKey(0)
    x = jax.random.normal(key, (B, N, dim), dtype=jnp.float32)

    # Deterministic parameter init, matching nn.Parameter(init_values * torch.ones(dim)).
    gamma = jnp.full((dim,), init_values, dtype=jnp.float32)

    y = layer_scale(x, gamma)
    y = jax.block_until_ready(y)

    y_ref = x * gamma
    assert y.shape == x.shape and y.dtype == x.dtype
    assert jnp.allclose(y, y_ref, atol=1e-6, rtol=1e-6)

    # Second check: row count not divisible by the lane-fold factor and dim not
    # folding to 128 — exercises the un-folded / masked-store path.
    k2 = jax.random.PRNGKey(0)
    x_b = jax.random.normal(k2, (2, 7, 48), dtype=jnp.float32)
    gamma_b = jnp.full((48,), init_values, dtype=jnp.float32)
    y_b = jax.block_until_ready(layer_scale(x_b, gamma_b))
    assert jnp.allclose(y_b, x_b * gamma_b, atol=1e-6, rtol=1e-6)

    print("KERNEL_OK")
</pallas_src>

<mosaic_0001>
module attributes {stable_mosaic.version = 11 : i64} {
  func.func @_layer_scale_kernel(%arg0: i32, %arg1: memref<4x128xf32, #tpu.memory_space<vmem>>, %arg2: memref<1x128xf32, #tpu.memory_space<vmem>>, %arg3: memref<4x128xf32, #tpu.memory_space<vmem>>) attributes {dimension_semantics = [#tpu.dimension_semantics<parallel>], iteration_bounds = array<i64: 1>, scalar_prefetch = 0 : i64, scratch_operands = 0 : i64, tpu.core_type = #tpu.core_type<tc>, window_params = [{transform_indices = @transform_0, window_bounds = array<i64: 4, 128>}, {pipeline_mode = #tpu.pipeline_mode<synchronous>, transform_indices = @transform_1, window_bounds = array<i64: 1, 128>}, {transform_indices = @transform_2, window_bounds = array<i64: 4, 128>}]} {
    %c0 = arith.constant 0 : index
    %c0_0 = arith.constant 0 : index
    %0 = vector.load %arg1[%c0, %c0_0] : memref<4x128xf32, #tpu.memory_space<vmem>>, vector<4x128xf32>
    %c0_1 = arith.constant 0 : index
    %c0_2 = arith.constant 0 : index
    %1 = vector.load %arg2[%c0_1, %c0_2] : memref<1x128xf32, #tpu.memory_space<vmem>>, vector<1x128xf32>
    %2 = vector.broadcast %1 : vector<1x128xf32> to vector<4x128xf32>
    %3 = arith.mulf %0, %2 : vector<4x128xf32>
    %c0_3 = arith.constant 0 : index
    %c0_4 = arith.constant 0 : index
    %4 = vector.load %arg3[%c0_3, %c0_4] : memref<4x128xf32, #tpu.memory_space<vmem>>, vector<4x128xf32>
    tpu.vector_store %arg3[%c0_3, %c0_4], %3 {strides = array<i32>} : memref<4x128xf32, #tpu.memory_space<vmem>>, vector<4x128xf32>,
    return
  }
  func.func @transform_0(%arg0: i32) -> (i32, i32) {
    %c0_i32 = arith.constant 0 : i32
    %c0_i32_0 = arith.constant 0 : i32
    return %arg0, %c0_i32 : i32, i32
  }
  func.func @transform_1(%arg0: i32) -> (i32, i32) {
    %c0_i32 = arith.constant 0 : i32
    %c0_i32_0 = arith.constant 0 : i32
    %c0_i32_1 = arith.constant 0 : i32
    return %c0_i32, %c0_i32_0 : i32, i32
  }
  func.func @transform_2(%arg0: i32) -> (i32, i32) {
    %c0_i32 = arith.constant 0 : i32
    %c0_i32_0 = arith.constant 0 : i32
    return %arg0, %c0_i32 : i32, i32
  }
}

</mosaic_0001>

<llo_original>
// kernel: tpu_custom_call.1
$region0: #{tpu_custom_call.1}
  #allocation0 [shape = 'u32[]', space=smem, size = 0x4, offset = 0x4, fixed_abs, tag = 'smem constant byte address 0x4 - core index']
  #allocation1 [shape = 'u32[144,128]{1,0:T(1,128)}', space=vmem, size = 0x12000, scoped, tag = 'internal scratch']
  %s0 = inlined_call_operand.hbm [shape: f32[4,128], index: 0, kind: input, shape index: {}]
  %s1 = inlined_call_operand.vmem [shape: f32[1,128], index: 1, kind: input, shape index: {}]
  %s2 = inlined_call_operand.hbm [shape: f32[4,128], index: 2, kind: output, shape index: {}]
  %s3 = sld [smem:[#allocation0]]
  $region22: #{tpu_custom_call.1} parent=0
    _
  %s5 = ssub.s32 1, %s3
  %s6 = scalar_select 0, %s5, %s3
  $region1: #{tpu_custom_call.1} parent=0
    #allocation2 [shape = 'u8[2048]{0}', space=vmem, size = 0x800, scoped, tag = 'input window, operand 0, single buffered']
    #allocation3 [shape = 's32[1]{0}', space=sflag, size = 0x4, scoped, tag = 'scoped memory for tpu_custom_call.1']
    #allocation4 [shape = 's32[1]{0}', space=sflag, size = 0x4, scoped, tag = 'scoped memory for tpu_custom_call.1']
    #allocation5 [shape = 'u8[2048]{0}', space=vmem, size = 0x800, scoped, tag = 'output window, operand 0, single buffered']
    %7 = vsyncpa [#allocation3], 0
    %8 = vsyncpa [#allocation4], 0
    // Predicated region
    $region2: #{tpu_custom_call.1} parent=1 // pred_check
      _
    $region3: #{tpu_custom_call.1} parent=1 // pred_check_branch
      %10 = sbr.rel (0) target = $region5
    $region4: #{tpu_custom_call.1} parent=1 // pred_region
      %s12 = ssub.s32 64, 64
      %13 = vsyncadd [#allocation3], %s12
      %s15 = sshll.u32 [#allocation2], 4
      %s16 = int_to_ptr.vmem [resolvable:$true] %s15
      %18 = dma.hbm_to_vmem [thread:$0]  %s0, 64, %s16, [#allocation3]
    $region5: #{tpu_custom_call.1} parent=1 // pred_fallthru
      _
    // Predicated region
    $region6: #{tpu_custom_call.1} parent=1 // pred_check
      _
    $region7: #{tpu_custom_call.1} parent=1 // pred_check_branch
      %20 = sbr.rel (0) target = $region9
    $region8: #{tpu_custom_call.1} parent=1 // pred_region
      _
    $region9: #{tpu_custom_call.1} parent=1 // pred_fallthru
      _
    // Predicated region
    $region10: #{tpu_custom_call.1} parent=1 // pred_check
      _
    $region11: #{tpu_custom_call.1} parent=1 // pred_check_branch
      %22 = sbr.rel (0) target = $region13
    $region12: #{tpu_custom_call.1} parent=1 // pred_region
      %23 = dma.done [#allocation3], 64
    $region13: #{tpu_custom_call.1} parent=1 // pred_fallthru
      _
    %v24 = vld [vmem:[#allocation2] sm:$0xf]
    %v25 = vld [vmem:[%s1] sm:$0x1]
    %v27 = vlaneseq
    %v28 = vshrl.u32 %v27, 7
    %v29 = vsub.s32 0, %v28
    %v30 = vrot.slane %v25, %v29
    %v32 = vmul.f32 %v24, %v30
    %33 = vst [vmem:[#allocation5] sm:$0xf] %v32
    // Predicated region
    $region14: #{tpu_custom_call.1} parent=1 // pred_check
      _
    $region15: #{tpu_custom_call.1} parent=1 // pred_check_branch
      %35 = sbr.rel (0) target = $region17
    $region16: #{tpu_custom_call.1} parent=1 // pred_region
      %s37 = ssub.s32 64, 64
      %38 = vsyncadd [#allocation4], %s37
      %s40 = sshll.u32 [#allocation5], 4
      %s41 = int_to_ptr.vmem [resolvable:$true] %s40
      %43 = dma.vmem_to_hbm [thread:$0]  %s41, 64, %s2, [#allocation4]
    $region17: #{tpu_custom_call.1} parent=1 // pred_fallthru
      _
    // Predicated region
    $region18: #{tpu_custom_call.1} parent=1 // pred_check
      _
    $region19: #{tpu_custom_call.1} parent=1 // pred_check_branch
      %45 = sbr.rel (0) target = $region21
    $region20: #{tpu_custom_call.1} parent=1 // pred_region
      %46 = dma.done [#allocation4], 64
    $region21: #{tpu_custom_call.1} parent=1 // pred_fallthru
      _
    %47 = vsyncpa [#allocation3], 1
    %48 = vsyncpa [#allocation4], 1

</llo_original>
